<compile_context>
chip_gen: v6e
topology: v6e:2x2x1
jax: 0.10.0
libtpu: 0.0.40
codegen_flags: <defaults>
</compile_context>

<pallas_src>
import jax
import jax.numpy as jnp
from jax.experimental import pallas as pl
from jax.experimental.pallas import tpu as pltpu

NUM_BANDITS = 3   # depth of the one-hot
NUM_ACTIONS = 4
LANES = 128


def policy_kernel(tbl_ref, idx_ref, out_ref):
    # tbl_ref : SMEM f32[num_bandits*num_actions + 1]; tbl[d*A + a] = sigmoid(W.T)[d, a],
    #           last entry is the out-of-range default sigmoid(0) = 0.5.
    # idx_ref : VMEM (tile_rows, 128) int32 -- batch laid out on (sublane, lane).
    # out_ref : VMEM (num_actions, tile_rows, 128) f32 -- dense, full-width stores.
    idx = idx_ref[...]
    num_actions = out_ref.shape[0]
    num_bandits = (tbl_ref.shape[0] - 1) // num_actions
    oob = tbl_ref[num_bandits * num_actions]          # sigmoid(0) = 0.5

    # Hoisted compares: num_bandits dense vreg compares per tile, reused by every action.
    masks = [idx == d for d in range(num_bandits)]

    for a in range(num_actions):
        # Where-chain starting from the OOB default (no zeros+add accumulator).
        val = jnp.full(idx.shape, oob, jnp.float32)
        for d in range(num_bandits):
            val = jnp.where(masks[d], tbl_ref[d * num_actions + a], val)
        out_ref[a, :, :] = val


def policy_forward(actions, weight, *, tile_rows=256):
    """actions: (B,) int in [0, num_bandits); weight: (num_actions, num_bandits) f32.

    Returns (B, num_actions) f32 = sigmoid(one_hot(actions) @ weight.T).
    """
    B = int(actions.shape[0])
    num_actions, num_bandits = weight.shape

    # Precomputed sigmoid table (one tiny fused XLA op): sigmoid(W.T) flattened,
    # plus the OOB default 0.5 appended at the end.
    table = jnp.concatenate(
        [jax.nn.sigmoid(jnp.asarray(weight, jnp.float32).T).reshape(-1),
         jnp.array([0.5], jnp.float32)]
    )

    # Batch-on-lanes tiling: rows of 128 batch elements, in multiples of 8 sublanes.
    rows = -(-B // LANES)
    rows = max(8, ((rows + 7) // 8) * 8)
    tile_rows = min(tile_rows, rows)
    # Keep >= 2 grid steps when the batch permits so v7x's two TensorCores both work.
    if rows // tile_rows < 2 and rows >= 16:
        tile_rows = ((rows // 2 + 7) // 8) * 8
    rows_pad = ((rows + tile_rows - 1) // tile_rows) * tile_rows

    # Dense int32 index slab; padded entries (index 0) are computed and sliced off.
    idx2d = (
        jnp.zeros((rows_pad * LANES,), jnp.int32)
        .at[:B]
        .set(actions.astype(jnp.int32))
        .reshape(rows_pad, LANES)
    )

    grid = (rows_pad // tile_rows,)
    out_padded = pl.pallas_call(
        policy_kernel,
        out_shape=jax.ShapeDtypeStruct((num_actions, rows_pad, LANES), jnp.float32),
        grid=grid,
        in_specs=[
            pl.BlockSpec(memory_space=pltpu.MemorySpace.SMEM),          # sigmoid table
            pl.BlockSpec((tile_rows, LANES), lambda i: (i, 0)),          # indices
        ],
        out_specs=pl.BlockSpec((num_actions, tile_rows, LANES), lambda i: (0, i, 0)),
        compiler_params=pltpu.CompilerParams(
            dimension_semantics=("parallel",),   # batch tiles split across TCs on v7x
        ),
    )(table, idx2d)

    # (A, rows_pad, 128) -> (A, batch) -> (batch, A): a tiny 4 x B transpose.
    return out_padded.reshape(num_actions, rows_pad * LANES)[:, :B].T


if __name__ == "__main__":
    key = jax.random.PRNGKey(0)

    # Deterministic parameter init, matching the module:
    # self.linear.weight = Parameter(torch.ones(num_actions, num_bandits))
    weight = jnp.ones((NUM_ACTIONS, NUM_BANDITS), jnp.float32)

    # Small batch of bandit indices (the module's `input`).
    B = 8
    actions = jax.random.randint(key, (B,), minval=0, maxval=NUM_BANDITS, dtype=jnp.int32)

    out = jax.block_until_ready(policy_forward(actions, weight))

    # Pure-JAX reference for correctness.
    one_hot_ref = jax.nn.one_hot(actions, NUM_BANDITS, dtype=jnp.float32)
    ref = jax.nn.sigmoid(one_hot_ref @ weight.T)

    assert out.shape == (B, NUM_ACTIONS), out.shape
    assert out.dtype == jnp.float32, out.dtype
    assert jnp.allclose(out, ref, atol=1e-6, rtol=1e-6), (out, ref)

    # TODO(synk): pull_arm() (numpy RNG environment step) and the REINFORCE training
    # loop are host-side logic, not part of the module's forward pass.

    print("KERNEL_OK")
</pallas_src>

<mosaic_0001>
module attributes {stable_mosaic.version = 11 : i64} {
  func.func @policy_kernel(%arg0: i32, %arg1: memref<13xf32, #tpu.memory_space<smem>>, %arg2: memref<8x128xi32, #tpu.memory_space<vmem>>, %arg3: memref<4x8x128xf32, #tpu.memory_space<vmem>>) attributes {dimension_semantics = [#tpu.dimension_semantics<parallel>], iteration_bounds = array<i64: 1>, scalar_prefetch = 0 : i64, scratch_operands = 0 : i64, tpu.core_type = #tpu.core_type<tc>, window_params = [{transform_indices = @transform_0, window_bounds = array<i64: 13>}, {transform_indices = @transform_1, window_bounds = array<i64: 8, 128>}, {transform_indices = @transform_2, window_bounds = array<i64: 4, 8, 128>}]} {
    %c0 = arith.constant 0 : index
    %c0_0 = arith.constant 0 : index
    %0 = vector.load %arg2[%c0, %c0_0] : memref<8x128xi32, #tpu.memory_space<vmem>>, vector<8x128xi32>
    %c12 = arith.constant 12 : index
    %1 = memref.load %arg1[%c12] : memref<13xf32, #tpu.memory_space<smem>>
    %c0_i32 = arith.constant 0 : i32
    %2 = vector.broadcast %c0_i32 : i32 to vector<8x128xi32>
    %3 = arith.cmpi eq, %0, %2 : vector<8x128xi32>
    %c1_i32 = arith.constant 1 : i32
    %4 = vector.broadcast %c1_i32 : i32 to vector<8x128xi32>
    %5 = arith.cmpi eq, %0, %4 : vector<8x128xi32>
    %c2_i32 = arith.constant 2 : i32
    %6 = vector.broadcast %c2_i32 : i32 to vector<8x128xi32>
    %7 = arith.cmpi eq, %0, %6 : vector<8x128xi32>
    %8 = vector.broadcast %1 : f32 to vector<8x128xf32>
    %c0_1 = arith.constant 0 : index
    %9 = memref.load %arg1[%c0_1] : memref<13xf32, #tpu.memory_space<smem>>
    %10 = vector.broadcast %9 : f32 to vector<8x128xf32>
    %11 = arith.select %3, %10, %8 : vector<8x128xi1>, vector<8x128xf32>
    %c4 = arith.constant 4 : index
    %12 = memref.load %arg1[%c4] : memref<13xf32, #tpu.memory_space<smem>>
    %13 = vector.broadcast %12 : f32 to vector<8x128xf32>
    %14 = arith.select %5, %13, %11 : vector<8x128xi1>, vector<8x128xf32>
    %c8 = arith.constant 8 : index
    %15 = memref.load %arg1[%c8] : memref<13xf32, #tpu.memory_space<smem>>
    %16 = vector.broadcast %15 : f32 to vector<8x128xf32>
    %17 = arith.select %7, %16, %14 : vector<8x128xi1>, vector<8x128xf32>
    %c0_2 = arith.constant 0 : index
    %c0_3 = arith.constant 0 : index
    %c0_4 = arith.constant 0 : index
    %18 = vector.load %arg3[%c0_2, %c0_3, %c0_4] : memref<4x8x128xf32, #tpu.memory_space<vmem>>, vector<1x8x128xf32>
    %19 = vector.shape_cast %18 : vector<1x8x128xf32> to vector<8x128xf32>
    %20 = vector.shape_cast %17 : vector<8x128xf32> to vector<1x8x128xf32>
    tpu.vector_store %arg3[%c0_2, %c0_3, %c0_4], %20 {strides = array<i32>} : memref<4x8x128xf32, #tpu.memory_space<vmem>>, vector<1x8x128xf32>,
    %21 = vector.broadcast %1 : f32 to vector<8x128xf32>
    %c1 = arith.constant 1 : index
    %22 = memref.load %arg1[%c1] : memref<13xf32, #tpu.memory_space<smem>>
    %23 = vector.broadcast %22 : f32 to vector<8x128xf32>
    %24 = arith.select %3, %23, %21 : vector<8x128xi1>, vector<8x128xf32>
    %c5 = arith.constant 5 : index
    %25 = memref.load %arg1[%c5] : memref<13xf32, #tpu.memory_space<smem>>
    %26 = vector.broadcast %25 : f32 to vector<8x128xf32>
    %27 = arith.select %5, %26, %24 : vector<8x128xi1>, vector<8x128xf32>
    %c9 = arith.constant 9 : index
    %28 = memref.load %arg1[%c9] : memref<13xf32, #tpu.memory_space<smem>>
    %29 = vector.broadcast %28 : f32 to vector<8x128xf32>
    %30 = arith.select %7, %29, %27 : vector<8x128xi1>, vector<8x128xf32>
    %c1_5 = arith.constant 1 : index
    %c0_6 = arith.constant 0 : index
    %c0_7 = arith.constant 0 : index
    %31 = vector.load %arg3[%c1_5, %c0_6, %c0_7] : memref<4x8x128xf32, #tpu.memory_space<vmem>>, vector<1x8x128xf32>
    %32 = vector.shape_cast %31 : vector<1x8x128xf32> to vector<8x128xf32>
    %33 = vector.shape_cast %30 : vector<8x128xf32> to vector<1x8x128xf32>
    tpu.vector_store %arg3[%c1_5, %c0_6, %c0_7], %33 {strides = array<i32>} : memref<4x8x128xf32, #tpu.memory_space<vmem>>, vector<1x8x128xf32>,
    %34 = vector.broadcast %1 : f32 to vector<8x128xf32>
    %c2 = arith.constant 2 : index
    %35 = memref.load %arg1[%c2] : memref<13xf32, #tpu.memory_space<smem>>
    %36 = vector.broadcast %35 : f32 to vector<8x128xf32>
    %37 = arith.select %3, %36, %34 : vector<8x128xi1>, vector<8x128xf32>
    %c6 = arith.constant 6 : index
    %38 = memref.load %arg1[%c6] : memref<13xf32, #tpu.memory_space<smem>>
    %39 = vector.broadcast %38 : f32 to vector<8x128xf32>
    %40 = arith.select %5, %39, %37 : vector<8x128xi1>, vector<8x128xf32>
    %c10 = arith.constant 10 : index
    %41 = memref.load %arg1[%c10] : memref<13xf32, #tpu.memory_space<smem>>
    %42 = vector.broadcast %41 : f32 to vector<8x128xf32>
    %43 = arith.select %7, %42, %40 : vector<8x128xi1>, vector<8x128xf32>
    %c2_8 = arith.constant 2 : index
    %c0_9 = arith.constant 0 : index
    %c0_10 = arith.constant 0 : index
    %44 = vector.load %arg3[%c2_8, %c0_9, %c0_10] : memref<4x8x128xf32, #tpu.memory_space<vmem>>, vector<1x8x128xf32>
    %45 = vector.shape_cast %44 : vector<1x8x128xf32> to vector<8x128xf32>
    %46 = vector.shape_cast %43 : vector<8x128xf32> to vector<1x8x128xf32>
    tpu.vector_store %arg3[%c2_8, %c0_9, %c0_10], %46 {strides = array<i32>} : memref<4x8x128xf32, #tpu.memory_space<vmem>>, vector<1x8x128xf32>,
    %47 = vector.broadcast %1 : f32 to vector<8x128xf32>
    %c3 = arith.constant 3 : index
    %48 = memref.load %arg1[%c3] : memref<13xf32, #tpu.memory_space<smem>>
    %49 = vector.broadcast %48 : f32 to vector<8x128xf32>
    %50 = arith.select %3, %49, %47 : vector<8x128xi1>, vector<8x128xf32>
    %c7 = arith.constant 7 : index
    %51 = memref.load %arg1[%c7] : memref<13xf32, #tpu.memory_space<smem>>
    %52 = vector.broadcast %51 : f32 to vector<8x128xf32>
    %53 = arith.select %5, %52, %50 : vector<8x128xi1>, vector<8x128xf32>
    %c11 = arith.constant 11 : index
    %54 = memref.load %arg1[%c11] : memref<13xf32, #tpu.memory_space<smem>>
    %55 = vector.broadcast %54 : f32 to vector<8x128xf32>
    %56 = arith.select %7, %55, %53 : vector<8x128xi1>, vector<8x128xf32>
    %c3_11 = arith.constant 3 : index
    %c0_12 = arith.constant 0 : index
    %c0_13 = arith.constant 0 : index
    %57 = vector.load %arg3[%c3_11, %c0_12, %c0_13] : memref<4x8x128xf32, #tpu.memory_space<vmem>>, vector<1x8x128xf32>
    %58 = vector.shape_cast %57 : vector<1x8x128xf32> to vector<8x128xf32>
    %59 = vector.shape_cast %56 : vector<8x128xf32> to vector<1x8x128xf32>
    tpu.vector_store %arg3[%c3_11, %c0_12, %c0_13], %59 {strides = array<i32>} : memref<4x8x128xf32, #tpu.memory_space<vmem>>, vector<1x8x128xf32>,
    return
  }
  func.func @transform_0(%arg0: i32) -> i32 {
    %c0_i32 = arith.constant 0 : i32
    %c0_i32_0 = arith.constant 0 : i32
    return %c0_i32 : i32
  }
  func.func @transform_1(%arg0: i32) -> (i32, i32) {
    %c0_i32 = arith.constant 0 : i32
    %c0_i32_0 = arith.constant 0 : i32
    return %arg0, %c0_i32 : i32, i32
  }
  func.func @transform_2(%arg0: i32) -> (i32, i32, i32) {
    %c0_i32 = arith.constant 0 : i32
    %c0_i32_0 = arith.constant 0 : i32
    %c0_i32_1 = arith.constant 0 : i32
    return %c0_i32, %arg0, %c0_i32_0 : i32, i32, i32
  }
}

</mosaic_0001>

<llo_original>
// kernel: tpu_custom_call.1
$region0: #{tpu_custom_call.1}
  #allocation0 [shape = 'u32[]', space=smem, size = 0x4, offset = 0x4, fixed_abs, tag = 'smem constant byte address 0x4 - core index']
  #allocation1 [shape = 'u32[144,128]{1,0:T(1,128)}', space=vmem, size = 0x12000, scoped, tag = 'internal scratch']
  %s0 = inlined_call_operand.hbm [shape: f32[13], index: 0, kind: input, shape index: {}]
  %s1 = inlined_call_operand.hbm [shape: s32[8,128], index: 1, kind: input, shape index: {}]
  %s2 = inlined_call_operand.hbm [shape: f32[4,8,128], index: 2, kind: output, shape index: {}]
  %s3 = sld [smem:[#allocation0]]
  $region26: #{tpu_custom_call.1} parent=0
    _
  %s5 = ssub.s32 1, %s3
  %s6 = scalar_select 0, %s5, %s3
  $region1: #{tpu_custom_call.1} parent=0
    #allocation2 [shape = 'u8[512]{0}', space=smem, size = 0x200, scoped, tag = 'input window, operand 0, single buffered']
    #allocation3 [shape = 's32[1]{0}', space=sflag, size = 0x4, scoped, tag = 'scoped memory for tpu_custom_call.1']
    #allocation4 [shape = 's32[1]{0}', space=sflag, size = 0x4, scoped, tag = 'scoped memory for tpu_custom_call.1']
    #allocation5 [shape = 's32[1]{0}', space=sflag, size = 0x4, scoped, tag = 'scoped memory for tpu_custom_call.1']
    #allocation6 [shape = 'u8[4096]{0}', space=vmem, size = 0x1000, scoped, tag = 'input window, operand 1, single buffered']
    #allocation7 [shape = 'u8[16384]{0}', space=vmem, size = 0x4000, scoped, tag = 'output window, operand 0, single buffered']
    %7 = vsyncpa [#allocation5], 0
    %8 = vsyncpa [#allocation3], 0
    %9 = vsyncpa [#allocation4], 0
    // Predicated region
    $region2: #{tpu_custom_call.1} parent=1 // pred_check
      _
    $region3: #{tpu_custom_call.1} parent=1 // pred_check_branch
      %11 = sbr.rel (0) target = $region5
    $region4: #{tpu_custom_call.1} parent=1 // pred_region
      %s13 = ssub.s32 16, 16
      %14 = vsyncadd [#allocation5], %s13
      %17 = dma.hbm_to_smem %s0, 16, [#allocation2], [#allocation5]
    $region5: #{tpu_custom_call.1} parent=1 // pred_fallthru
      _
    // Predicated region
    $region6: #{tpu_custom_call.1} parent=1 // pred_check
      _
    $region7: #{tpu_custom_call.1} parent=1 // pred_check_branch
      %19 = sbr.rel (0) target = $region9
    $region8: #{tpu_custom_call.1} parent=1 // pred_region
      %s21 = ssub.s32 128, 128
      %22 = vsyncadd [#allocation3], %s21
      %s24 = sshll.u32 [#allocation6], 4
      %s25 = int_to_ptr.vmem [resolvable:$true] %s24
      %27 = dma.hbm_to_vmem [thread:$0]  %s1, 128, %s25, [#allocation3]
    $region9: #{tpu_custom_call.1} parent=1 // pred_fallthru
      _
    // Predicated region
    $region10: #{tpu_custom_call.1} parent=1 // pred_check
      _
    $region11: #{tpu_custom_call.1} parent=1 // pred_check_branch
      %29 = sbr.rel (0) target = $region13
    $region12: #{tpu_custom_call.1} parent=1 // pred_region
      %30 = dma.done [#allocation5], 16
    $region13: #{tpu_custom_call.1} parent=1 // pred_fallthru
      _
    // Predicated region
    $region14: #{tpu_custom_call.1} parent=1 // pred_check
      _
    $region15: #{tpu_custom_call.1} parent=1 // pred_check_branch
      %32 = sbr.rel (0) target = $region17
    $region16: #{tpu_custom_call.1} parent=1 // pred_region
      %33 = dma.done [#allocation3], 128
    $region17: #{tpu_custom_call.1} parent=1 // pred_fallthru
      _
    %34 = sfence
    %v35 = vld [vmem:[#allocation6] sm:$0xff]
    %s36 = sld [smem:[#allocation2 + $0xc]]
    %vm37 = vcmp.eq.s32.totalorder %v35, 0
    %vm38 = vcmp.eq.s32.totalorder %v35, 1
    %vm39 = vcmp.eq.s32.totalorder %v35, 2
    %v40 = vstv %s36
    %s41 = sld [smem:[#allocation2]]
    %v42 = vstv %s41
    %v43 = vsel %vm37, %v42, %v40
    %s44 = sld [smem:[#allocation2 + $0x4]]
    %v45 = vstv %s44
    %v46 = vsel %vm38, %v45, %v43
    %s47 = sld [smem:[#allocation2 + $0x8]]
    %v48 = vstv %s47
    %v49 = vsel %vm39, %v48, %v46
    %50 = vst [vmem:[#allocation7] sm:$0xff] %v49
    %s51 = sld [smem:[#allocation2 + $0x1]]
    %v52 = vstv %s51
    %v53 = vsel %vm37, %v52, %v40
    %s54 = sld [smem:[#allocation2 + $0x5]]
    %v55 = vstv %s54
    %v56 = vsel %vm38, %v55, %v53
    %s57 = sld [smem:[#allocation2 + $0x9]]
    %v58 = vstv %s57
    %v59 = vsel %vm39, %v58, %v56
    %s60 = scalar_lea.vmem [#allocation7], 8
    %61 = vst [vmem:[%s60] sm:$0xff] %v59
    %s62 = sld [smem:[#allocation2 + $0x2]]
    %v63 = vstv %s62
    %v64 = vsel %vm37, %v63, %v40
    %s65 = sld [smem:[#allocation2 + $0x6]]
    %v66 = vstv %s65
    %v67 = vsel %vm38, %v66, %v64
    %s68 = sld [smem:[#allocation2 + $0xa]]
    %v69 = vstv %s68
    %v70 = vsel %vm39, %v69, %v67
    %s71 = scalar_lea.vmem [#allocation7], 16
    %72 = vst [vmem:[%s71] sm:$0xff] %v70
    %s73 = sld [smem:[#allocation2 + $0x3]]
    %v74 = vstv %s73
    %v75 = vsel %vm37, %v74, %v40
    %s76 = sld [smem:[#allocation2 + $0x7]]
    %v77 = vstv %s76
    %v78 = vsel %vm38, %v77, %v75
    %s79 = sld [smem:[#allocation2 + $0xb]]
    %v80 = vstv %s79
    %v81 = vsel %vm39, %v80, %v78
    %s82 = scalar_lea.vmem [#allocation7], 24
    %83 = vst [vmem:[%s82] sm:$0xff] %v81
    // Predicated region
    $region18: #{tpu_custom_call.1} parent=1 // pred_check
      _
    $region19: #{tpu_custom_call.1} parent=1 // pred_check_branch
      %85 = sbr.rel (0) target = $region21
    $region20: #{tpu_custom_call.1} parent=1 // pred_region
      %s87 = ssub.s32 512, 512
      %88 = vsyncadd [#allocation4], %s87
      %s89 = sshll.u32 [#allocation7], 4
      %s90 = int_to_ptr.vmem [resolvable:$true] %s89
      %95 = dma.vmem_to_hbm [thread:$0]  %s90, 512, %s2, [#allocation4], 128, 128, 8
    $region21: #{tpu_custom_call.1} parent=1 // pred_fallthru
      _
    // Predicated region
    $region22: #{tpu_custom_call.1} parent=1 // pred_check
      _
    $region23: #{tpu_custom_call.1} parent=1 // pred_check_branch
      %97 = sbr.rel (0) target = $region25
    $region24: #{tpu_custom_call.1} parent=1 // pred_region
      %98 = dma.done [#allocation4], 512
    $region25: #{tpu_custom_call.1} parent=1 // pred_fallthru
      _
    %99 = vsyncpa [#allocation3], 1
    %100 = vsyncpa [#allocation4], 1
    %101 = vsyncpa [#allocation5], 1

</llo_original>
